<compile_context>
chip_gen: v5e
topology: v5e:2x2
jax: 0.10.0
libtpu: 0.0.40
codegen_flags: <defaults>
</compile_context>

<pallas_src>
import math
import functools

import jax
import jax.numpy as jnp
from jax.experimental import pallas as pl
from jax.experimental.pallas import tpu as pltpu


# ----------------------------------------------------------------------------
# Fused MHA kernel: projections + attention + output projection, per batch
# ----------------------------------------------------------------------------
def _mha_kernel(ind_ref, q_ref, k_ref, v_ref,
                wq_ref, wk_ref, wv_ref, wo_ref,
                bq_ref, bk_ref, bv_ref, bo_ref,
                o_ref, *, num_heads, head_dim):
    # Refs for the current batch: q (Sq, E) f32, k/v (Sk, E) f32;
    # weights (E, E) bf16 (grid-resident); biases (1, E) f32; output (Sq, E) f32.
    q_in = q_ref[...].astype(jnp.bfloat16)
    k_in = k_ref[...].astype(jnp.bfloat16)
    v_in = v_ref[...].astype(jnp.bfloat16)

    qp = jnp.dot(q_in, wq_ref[...], preferred_element_type=jnp.float32) + bq_ref[...]
    kp = jnp.dot(k_in, wk_ref[...], preferred_element_type=jnp.float32) + bk_ref[...]
    vp = jnp.dot(v_in, wv_ref[...], preferred_element_type=jnp.float32) + bv_ref[...]

    # indicator != 0  =>  softmax(1 - sigmoid(s)) == softmax(sigmoid(-s)):
    # fold the indicator into the sign of the score scale.
    scale = 1.0 / math.sqrt(head_dim)
    signed_scale = jnp.where(ind_ref[0] == 0, scale, -scale).astype(jnp.float32)

    outs = []
    # Static unroll over heads (num_heads is small); head slices are static
    # lane windows, so no data-dependent layout work is generated.
    for h in range(num_heads):
        lo, hi = h * head_dim, (h + 1) * head_dim
        qh = qp[:, lo:hi].astype(jnp.bfloat16)
        kh = kp[:, lo:hi].astype(jnp.bfloat16)
        vh = vp[:, lo:hi].astype(jnp.bfloat16)
        # Q @ K^T via dot_general contracting the last dims (no explicit .T).
        s = jax.lax.dot_general(
            qh, kh, (((1,), (1,)), ((), ())), preferred_element_type=jnp.float32
        )
        p = jax.nn.sigmoid(s * signed_scale)
        # p in (0,1): exp cannot overflow -> skip the softmax max-subtraction.
        e = jnp.exp(p)
        p = e * pl.reciprocal(jnp.sum(e, axis=-1, keepdims=True), approx=True)
        outs.append(
            jnp.dot(p.astype(jnp.bfloat16), vh, preferred_element_type=jnp.float32)
        )
    # TODO(synk): mask (module default None) and dropout (dropout_prob=0) are no-ops.
    concat = jnp.concatenate(outs, axis=-1).astype(jnp.bfloat16)  # (Sq, E)
    o_ref[...] = (
        jnp.dot(concat, wo_ref[...], preferred_element_type=jnp.float32)
        + bo_ref[...]
    ).astype(o_ref.dtype)


# ----------------------------------------------------------------------------
# MultiHeadAttention forward
# ----------------------------------------------------------------------------
def multi_head_attention(params, queries, keys, values, indicator):
    """Replicates MultiHeadAttention.forward (mask=None, dropout_prob=0)."""
    num_heads = params["num_heads"]
    embed_dim = params["embed_dim"]
    head_dim = embed_dim // num_heads
    batch, seq_q, _ = queries.shape
    seq_kv = keys.shape[1]
    assert keys.shape == (batch, seq_kv, embed_dim)
    assert values.shape == (batch, seq_kv, embed_dim)

    kern = functools.partial(_mha_kernel, num_heads=num_heads, head_dim=head_dim)

    # index_maps receive (grid idx, *scalar-prefetch refs).
    def act_spec(seq):
        return pl.BlockSpec((None, seq, embed_dim), lambda b, ind: (b, 0, 0))

    w_spec = pl.BlockSpec((embed_dim, embed_dim), lambda b, ind: (0, 0))
    b_spec = pl.BlockSpec((1, embed_dim), lambda b, ind: (0, 0))

    ind = jnp.asarray([indicator], dtype=jnp.int32)

    out = pl.pallas_call(
        kern,
        out_shape=jax.ShapeDtypeStruct((batch, seq_q, embed_dim), jnp.float32),
        grid_spec=pltpu.PrefetchScalarGridSpec(
            num_scalar_prefetch=1,
            grid=(batch,),
            in_specs=[
                act_spec(seq_q),                 # queries
                act_spec(seq_kv),                # keys
                act_spec(seq_kv),                # values
                w_spec, w_spec, w_spec, w_spec,  # wq, wk, wv, wo  (grid-resident)
                b_spec, b_spec, b_spec, b_spec,  # bq, bk, bv, bo  (grid-resident)
            ],
            out_specs=pl.BlockSpec(
                (None, seq_q, embed_dim), lambda b, ind: (b, 0, 0)
            ),
        ),
        compiler_params=pltpu.CompilerParams(
            dimension_semantics=("parallel",)
        ),
    )(
        ind,
        queries, keys, values,
        params["wq"].astype(jnp.bfloat16),
        params["wk"].astype(jnp.bfloat16),
        params["wv"].astype(jnp.bfloat16),
        params["wo"].astype(jnp.bfloat16),
        params["bq"].reshape(1, embed_dim).astype(jnp.float32),
        params["bk"].reshape(1, embed_dim).astype(jnp.float32),
        params["bv"].reshape(1, embed_dim).astype(jnp.float32),
        params["bo"].reshape(1, embed_dim).astype(jnp.float32),
    )
    return out


# ----------------------------------------------------------------------------
# Pure-JAX f32 reference for correctness checking
# ----------------------------------------------------------------------------
def reference_mha(params, queries, keys, values, indicator):
    num_heads = params["num_heads"]
    embed_dim = params["embed_dim"]
    head_dim = embed_dim // num_heads
    batch, s_q, _ = queries.shape
    s_k = keys.shape[1]

    qp = queries @ params["wq"] + params["bq"]
    kp = keys @ params["wk"] + params["bk"]
    vp = values @ params["wv"] + params["bv"]
    qs = qp.reshape(batch, s_q, num_heads, head_dim).transpose(0, 2, 1, 3)
    ks = kp.reshape(batch, s_k, num_heads, head_dim).transpose(0, 2, 1, 3)
    vs = vp.reshape(batch, s_k, num_heads, head_dim).transpose(0, 2, 1, 3)
    scores = jnp.einsum("bhqd,bhkd->bhqk", qs, ks) / math.sqrt(head_dim)
    aw = jax.nn.sigmoid(scores)
    aw = jnp.where(indicator == 0, aw, 1.0 - aw)
    aw = jax.nn.softmax(aw, axis=-1)
    ao = jnp.einsum("bhqk,bhkd->bhqd", aw, vs)
    concat = ao.transpose(0, 2, 1, 3).reshape(batch, s_q, embed_dim)
    return concat @ params["wo"] + params["bo"]


def init_params(key, num_heads, embed_dim):
    ks = jax.random.split(key, 8)
    scale = 1.0 / math.sqrt(embed_dim)

    def w(k):
        return jax.random.uniform(
            k, (embed_dim, embed_dim), jnp.float32, -scale, scale
        )

    def b(k):
        return jax.random.uniform(k, (embed_dim,), jnp.float32, -scale, scale)

    return {
        "num_heads": num_heads,
        "embed_dim": embed_dim,
        "wq": w(ks[0]), "bq": b(ks[1]),
        "wk": w(ks[2]), "bk": b(ks[3]),
        "wv": w(ks[4]), "bv": b(ks[5]),
        "wo": w(ks[6]), "bo": b(ks[7]),
    }


if __name__ == "__main__":
    num_heads = 4
    embed_dim = 32
    batch = 2
    seq = 8

    key = jax.random.PRNGKey(0)
    kq, kk, kv, kp = jax.random.split(key, 4)
    queries = jax.random.normal(kq, (batch, seq, embed_dim), jnp.float32)
    keys = jax.random.normal(kk, (batch, seq, embed_dim), jnp.float32)
    values = jax.random.normal(kv, (batch, seq, embed_dim), jnp.float32)
    params = init_params(kp, num_heads, embed_dim)

    ok = True
    for indicator in (0, 1):
        out = multi_head_attention(params, queries, keys, values, indicator)
        out = jax.block_until_ready(out)
        ref = reference_mha(params, queries, keys, values, indicator)
        # bf16 MXU operands (f32 accumulation) + EUP approx reciprocal loosen
        # numerics slightly vs the f32 reference.
        if not jnp.allclose(out, ref, atol=2e-2, rtol=2e-2):
            ok = False

    if ok:
        print("KERNEL_OK")
    else:
        print("KERNEL_MISMATCH")
</pallas_src>

<mosaic_0001>
module attributes {stable_mosaic.version = 11 : i64} {
  func.func @_mha_kernel(%arg0: i32, %arg1: memref<1xi32, #tpu.memory_space<smem>>, %arg2: memref<1x8x32xf32, #tpu.memory_space<vmem>>, %arg3: memref<1x8x32xf32, #tpu.memory_space<vmem>>, %arg4: memref<1x8x32xf32, #tpu.memory_space<vmem>>, %arg5: memref<32x32xbf16, #tpu.memory_space<vmem>>, %arg6: memref<32x32xbf16, #tpu.memory_space<vmem>>, %arg7: memref<32x32xbf16, #tpu.memory_space<vmem>>, %arg8: memref<32x32xbf16, #tpu.memory_space<vmem>>, %arg9: memref<1x32xf32, #tpu.memory_space<vmem>>, %arg10: memref<1x32xf32, #tpu.memory_space<vmem>>, %arg11: memref<1x32xf32, #tpu.memory_space<vmem>>, %arg12: memref<1x32xf32, #tpu.memory_space<vmem>>, %arg13: memref<1x8x32xf32, #tpu.memory_space<vmem>>) attributes {dimension_semantics = [#tpu.dimension_semantics<parallel>], iteration_bounds = array<i64: 2>, scalar_prefetch = 1 : i64, scratch_operands = 0 : i64, tpu.core_type = #tpu.core_type<tc>, window_params = [{transform_indices = @transform_0, window_bounds = array<i64: 1, 8, 32>}, {transform_indices = @transform_1, window_bounds = array<i64: 1, 8, 32>}, {transform_indices = @transform_2, window_bounds = array<i64: 1, 8, 32>}, {pipeline_mode = #tpu.pipeline_mode<synchronous>, transform_indices = @transform_3, window_bounds = array<i64: 32, 32>}, {pipeline_mode = #tpu.pipeline_mode<synchronous>, transform_indices = @transform_4, window_bounds = array<i64: 32, 32>}, {pipeline_mode = #tpu.pipeline_mode<synchronous>, transform_indices = @transform_5, window_bounds = array<i64: 32, 32>}, {pipeline_mode = #tpu.pipeline_mode<synchronous>, transform_indices = @transform_6, window_bounds = array<i64: 32, 32>}, {pipeline_mode = #tpu.pipeline_mode<synchronous>, transform_indices = @transform_7, window_bounds = array<i64: 1, 32>}, {pipeline_mode = #tpu.pipeline_mode<synchronous>, transform_indices = @transform_8, window_bounds = array<i64: 1, 32>}, {pipeline_mode = #tpu.pipeline_mode<synchronous>, transform_indices = @transform_9, window_bounds = array<i64: 1, 32>}, {pipeline_mode = #tpu.pipeline_mode<synchronous>, transform_indices = @transform_10, window_bounds = array<i64: 1, 32>}, {transform_indices = @transform_11, window_bounds = array<i64: 1, 8, 32>}]} {
    %c0 = arith.constant 0 : index
    %c0_0 = arith.constant 0 : index
    %c0_1 = arith.constant 0 : index
    %0 = vector.load %arg2[%c0, %c0_0, %c0_1] : memref<1x8x32xf32, #tpu.memory_space<vmem>>, vector<1x8x32xf32>
    %1 = vector.shape_cast %0 : vector<1x8x32xf32> to vector<8x32xf32>
    %2 = arith.truncf %1 : vector<8x32xf32> to vector<8x32xbf16>
    %c0_2 = arith.constant 0 : index
    %c0_3 = arith.constant 0 : index
    %c0_4 = arith.constant 0 : index
    %3 = vector.load %arg3[%c0_2, %c0_3, %c0_4] : memref<1x8x32xf32, #tpu.memory_space<vmem>>, vector<1x8x32xf32>
    %4 = vector.shape_cast %3 : vector<1x8x32xf32> to vector<8x32xf32>
    %5 = arith.truncf %4 : vector<8x32xf32> to vector<8x32xbf16>
    %c0_5 = arith.constant 0 : index
    %c0_6 = arith.constant 0 : index
    %c0_7 = arith.constant 0 : index
    %6 = vector.load %arg4[%c0_5, %c0_6, %c0_7] : memref<1x8x32xf32, #tpu.memory_space<vmem>>, vector<1x8x32xf32>
    %7 = vector.shape_cast %6 : vector<1x8x32xf32> to vector<8x32xf32>
    %8 = arith.truncf %7 : vector<8x32xf32> to vector<8x32xbf16>
    %c0_8 = arith.constant 0 : index
    %c0_9 = arith.constant 0 : index
    %9 = vector.load %arg5[%c0_8, %c0_9] : memref<32x32xbf16, #tpu.memory_space<vmem>>, vector<32x32xbf16>
    %cst = arith.constant dense<0.000000e+00> : vector<8x32xf32>
    %10 = tpu.matmul %2, %9, %cst {dimension_numbers = #tpu.dot_dimension_numbers<[1], [0], [0], [1], [0, 0, 1, 1], [], []>} : vector<8x32xbf16>, vector<32x32xbf16>, vector<8x32xf32> -> vector<8x32xf32>
    %c0_10 = arith.constant 0 : index
    %c0_11 = arith.constant 0 : index
    %11 = vector.load %arg9[%c0_10, %c0_11] : memref<1x32xf32, #tpu.memory_space<vmem>>, vector<1x32xf32>
    %12 = vector.broadcast %11 : vector<1x32xf32> to vector<8x32xf32>
    %13 = arith.addf %10, %12 : vector<8x32xf32>
    %c0_12 = arith.constant 0 : index
    %c0_13 = arith.constant 0 : index
    %14 = vector.load %arg6[%c0_12, %c0_13] : memref<32x32xbf16, #tpu.memory_space<vmem>>, vector<32x32xbf16>
    %cst_14 = arith.constant dense<0.000000e+00> : vector<8x32xf32>
    %15 = tpu.matmul %5, %14, %cst_14 {dimension_numbers = #tpu.dot_dimension_numbers<[1], [0], [0], [1], [0, 0, 1, 1], [], []>} : vector<8x32xbf16>, vector<32x32xbf16>, vector<8x32xf32> -> vector<8x32xf32>
    %c0_15 = arith.constant 0 : index
    %c0_16 = arith.constant 0 : index
    %16 = vector.load %arg10[%c0_15, %c0_16] : memref<1x32xf32, #tpu.memory_space<vmem>>, vector<1x32xf32>
    %17 = vector.broadcast %16 : vector<1x32xf32> to vector<8x32xf32>
    %18 = arith.addf %15, %17 : vector<8x32xf32>
    %c0_17 = arith.constant 0 : index
    %c0_18 = arith.constant 0 : index
    %19 = vector.load %arg7[%c0_17, %c0_18] : memref<32x32xbf16, #tpu.memory_space<vmem>>, vector<32x32xbf16>
    %cst_19 = arith.constant dense<0.000000e+00> : vector<8x32xf32>
    %20 = tpu.matmul %8, %19, %cst_19 {dimension_numbers = #tpu.dot_dimension_numbers<[1], [0], [0], [1], [0, 0, 1, 1], [], []>} : vector<8x32xbf16>, vector<32x32xbf16>, vector<8x32xf32> -> vector<8x32xf32>
    %c0_20 = arith.constant 0 : index
    %c0_21 = arith.constant 0 : index
    %21 = vector.load %arg11[%c0_20, %c0_21] : memref<1x32xf32, #tpu.memory_space<vmem>>, vector<1x32xf32>
    %22 = vector.broadcast %21 : vector<1x32xf32> to vector<8x32xf32>
    %23 = arith.addf %20, %22 : vector<8x32xf32>
    %c0_22 = arith.constant 0 : index
    %24 = memref.load %arg1[%c0_22] : memref<1xi32, #tpu.memory_space<smem>>
    %c0_i32 = arith.constant 0 : i32
    %25 = arith.cmpi eq, %24, %c0_i32 : i32
    %cst_23 = arith.constant 0.353553385 : f32
    %cst_24 = arith.constant -0.353553385 : f32
    %26 = arith.select %25, %cst_23, %cst_24 : f32
    %27 = vector.extract_strided_slice %13 {offsets = [0, 0], sizes = [8, 8], strides = [1, 1]} : vector<8x32xf32> to vector<8x8xf32>
    %28 = arith.truncf %27 : vector<8x8xf32> to vector<8x8xbf16>
    %29 = vector.extract_strided_slice %18 {offsets = [0, 0], sizes = [8, 8], strides = [1, 1]} : vector<8x32xf32> to vector<8x8xf32>
    %30 = arith.truncf %29 : vector<8x8xf32> to vector<8x8xbf16>
    %31 = vector.extract_strided_slice %23 {offsets = [0, 0], sizes = [8, 8], strides = [1, 1]} : vector<8x32xf32> to vector<8x8xf32>
    %32 = arith.truncf %31 : vector<8x8xf32> to vector<8x8xbf16>
    %cst_25 = arith.constant dense<0.000000e+00> : vector<8x8xf32>
    %33 = tpu.matmul %28, %30, %cst_25 {dimension_numbers = #tpu.dot_dimension_numbers<[1], [1], [0], [0], [0, 0, 1, 0], [], []>} : vector<8x8xbf16>, vector<8x8xbf16>, vector<8x8xf32> -> vector<8x8xf32>
    %34 = vector.broadcast %26 : f32 to vector<8x8xf32>
    %35 = arith.mulf %33, %34 : vector<8x8xf32>
    %36 = arith.negf %35 : vector<8x8xf32>
    %37 = math.exp %36 : vector<8x8xf32>
    %cst_26 = arith.constant 1.000000e+00 : f32
    %38 = vector.broadcast %cst_26 : f32 to vector<8x8xf32>
    %39 = arith.addf %38, %37 : vector<8x8xf32>
    %40 = arith.divf %38, %39 : vector<8x8xf32>
    %41 = math.exp %40 : vector<8x8xf32>
    %cst_27 = arith.constant dense<0.000000e+00> : vector<8xf32>
    %42 = vector.multi_reduction <add>, %41, %cst_27 [1] : vector<8x8xf32> to vector<8xf32>
    %43 = vector.shape_cast %42 : vector<8xf32> to vector<8x1xf32>
    %44 = tpu.reciprocal %43 {approx = true} : vector<8x1xf32> -> vector<8x1xf32>
    %45 = vector.broadcast %44 : vector<8x1xf32> to vector<8x8xf32>
    %46 = arith.mulf %41, %45 : vector<8x8xf32>
    %47 = arith.truncf %46 : vector<8x8xf32> to vector<8x8xbf16>
    %cst_28 = arith.constant dense<0.000000e+00> : vector<8x8xf32>
    %48 = tpu.matmul %47, %32, %cst_28 {dimension_numbers = #tpu.dot_dimension_numbers<[1], [0], [0], [1], [0, 0, 1, 1], [], []>} : vector<8x8xbf16>, vector<8x8xbf16>, vector<8x8xf32> -> vector<8x8xf32>
    %49 = vector.extract_strided_slice %13 {offsets = [0, 8], sizes = [8, 8], strides = [1, 1]} : vector<8x32xf32> to vector<8x8xf32>
    %50 = arith.truncf %49 : vector<8x8xf32> to vector<8x8xbf16>
    %51 = vector.extract_strided_slice %18 {offsets = [0, 8], sizes = [8, 8], strides = [1, 1]} : vector<8x32xf32> to vector<8x8xf32>
    %52 = arith.truncf %51 : vector<8x8xf32> to vector<8x8xbf16>
    %53 = vector.extract_strided_slice %23 {offsets = [0, 8], sizes = [8, 8], strides = [1, 1]} : vector<8x32xf32> to vector<8x8xf32>
    %54 = arith.truncf %53 : vector<8x8xf32> to vector<8x8xbf16>
    %cst_29 = arith.constant dense<0.000000e+00> : vector<8x8xf32>
    %55 = tpu.matmul %50, %52, %cst_29 {dimension_numbers = #tpu.dot_dimension_numbers<[1], [1], [0], [0], [0, 0, 1, 0], [], []>} : vector<8x8xbf16>, vector<8x8xbf16>, vector<8x8xf32> -> vector<8x8xf32>
    %56 = vector.broadcast %26 : f32 to vector<8x8xf32>
    %57 = arith.mulf %55, %56 : vector<8x8xf32>
    %58 = arith.negf %57 : vector<8x8xf32>
    %59 = math.exp %58 : vector<8x8xf32>
    %cst_30 = arith.constant 1.000000e+00 : f32
    %60 = vector.broadcast %cst_30 : f32 to vector<8x8xf32>
    %61 = arith.addf %60, %59 : vector<8x8xf32>
    %62 = arith.divf %60, %61 : vector<8x8xf32>
    %63 = math.exp %62 : vector<8x8xf32>
    %cst_31 = arith.constant dense<0.000000e+00> : vector<8xf32>
    %64 = vector.multi_reduction <add>, %63, %cst_31 [1] : vector<8x8xf32> to vector<8xf32>
    %65 = vector.shape_cast %64 : vector<8xf32> to vector<8x1xf32>
    %66 = tpu.reciprocal %65 {approx = true} : vector<8x1xf32> -> vector<8x1xf32>
    %67 = vector.broadcast %66 : vector<8x1xf32> to vector<8x8xf32>
    %68 = arith.mulf %63, %67 : vector<8x8xf32>
    %69 = arith.truncf %68 : vector<8x8xf32> to vector<8x8xbf16>
    %cst_32 = arith.constant dense<0.000000e+00> : vector<8x8xf32>
    %70 = tpu.matmul %69, %54, %cst_32 {dimension_numbers = #tpu.dot_dimension_numbers<[1], [0], [0], [1], [0, 0, 1, 1], [], []>} : vector<8x8xbf16>, vector<8x8xbf16>, vector<8x8xf32> -> vector<8x8xf32>
    %71 = vector.extract_strided_slice %13 {offsets = [0, 16], sizes = [8, 8], strides = [1, 1]} : vector<8x32xf32> to vector<8x8xf32>
    %72 = arith.truncf %71 : vector<8x8xf32> to vector<8x8xbf16>
    %73 = vector.extract_strided_slice %18 {offsets = [0, 16], sizes = [8, 8], strides = [1, 1]} : vector<8x32xf32> to vector<8x8xf32>
    %74 = arith.truncf %73 : vector<8x8xf32> to vector<8x8xbf16>
    %75 = vector.extract_strided_slice %23 {offsets = [0, 16], sizes = [8, 8], strides = [1, 1]} : vector<8x32xf32> to vector<8x8xf32>
    %76 = arith.truncf %75 : vector<8x8xf32> to vector<8x8xbf16>
    %cst_33 = arith.constant dense<0.000000e+00> : vector<8x8xf32>
    %77 = tpu.matmul %72, %74, %cst_33 {dimension_numbers = #tpu.dot_dimension_numbers<[1], [1], [0], [0], [0, 0, 1, 0], [], []>} : vector<8x8xbf16>, vector<8x8xbf16>, vector<8x8xf32> -> vector<8x8xf32>
    %78 = vector.broadcast %26 : f32 to vector<8x8xf32>
    %79 = arith.mulf %77, %78 : vector<8x8xf32>
    %80 = arith.negf %79 : vector<8x8xf32>
    %81 = math.exp %80 : vector<8x8xf32>
    %cst_34 = arith.constant 1.000000e+00 : f32
    %82 = vector.broadcast %cst_34 : f32 to vector<8x8xf32>
    %83 = arith.addf %82, %81 : vector<8x8xf32>
    %84 = arith.divf %82, %83 : vector<8x8xf32>
    %85 = math.exp %84 : vector<8x8xf32>
    %cst_35 = arith.constant dense<0.000000e+00> : vector<8xf32>
    %86 = vector.multi_reduction <add>, %85, %cst_35 [1] : vector<8x8xf32> to vector<8xf32>
    %87 = vector.shape_cast %86 : vector<8xf32> to vector<8x1xf32>
    %88 = tpu.reciprocal %87 {approx = true} : vector<8x1xf32> -> vector<8x1xf32>
    %89 = vector.broadcast %88 : vector<8x1xf32> to vector<8x8xf32>
    %90 = arith.mulf %85, %89 : vector<8x8xf32>
    %91 = arith.truncf %90 : vector<8x8xf32> to vector<8x8xbf16>
    %cst_36 = arith.constant dense<0.000000e+00> : vector<8x8xf32>
    %92 = tpu.matmul %91, %76, %cst_36 {dimension_numbers = #tpu.dot_dimension_numbers<[1], [0], [0], [1], [0, 0, 1, 1], [], []>} : vector<8x8xbf16>, vector<8x8xbf16>, vector<8x8xf32> -> vector<8x8xf32>
    %93 = vector.extract_strided_slice %13 {offsets = [0, 24], sizes = [8, 8], strides = [1, 1]} : vector<8x32xf32> to vector<8x8xf32>
    %94 = arith.truncf %93 : vector<8x8xf32> to vector<8x8xbf16>
    %95 = vector.extract_strided_slice %18 {offsets = [0, 24], sizes = [8, 8], strides = [1, 1]} : vector<8x32xf32> to vector<8x8xf32>
    %96 = arith.truncf %95 : vector<8x8xf32> to vector<8x8xbf16>
    %97 = vector.extract_strided_slice %23 {offsets = [0, 24], sizes = [8, 8], strides = [1, 1]} : vector<8x32xf32> to vector<8x8xf32>
    %98 = arith.truncf %97 : vector<8x8xf32> to vector<8x8xbf16>
    %cst_37 = arith.constant dense<0.000000e+00> : vector<8x8xf32>
    %99 = tpu.matmul %94, %96, %cst_37 {dimension_numbers = #tpu.dot_dimension_numbers<[1], [1], [0], [0], [0, 0, 1, 0], [], []>} : vector<8x8xbf16>, vector<8x8xbf16>, vector<8x8xf32> -> vector<8x8xf32>
    %100 = vector.broadcast %26 : f32 to vector<8x8xf32>
    %101 = arith.mulf %99, %100 : vector<8x8xf32>
    %102 = arith.negf %101 : vector<8x8xf32>
    %103 = math.exp %102 : vector<8x8xf32>
    %cst_38 = arith.constant 1.000000e+00 : f32
    %104 = vector.broadcast %cst_38 : f32 to vector<8x8xf32>
    %105 = arith.addf %104, %103 : vector<8x8xf32>
    %106 = arith.divf %104, %105 : vector<8x8xf32>
    %107 = math.exp %106 : vector<8x8xf32>
    %cst_39 = arith.constant dense<0.000000e+00> : vector<8xf32>
    %108 = vector.multi_reduction <add>, %107, %cst_39 [1] : vector<8x8xf32> to vector<8xf32>
    %109 = vector.shape_cast %108 : vector<8xf32> to vector<8x1xf32>
    %110 = tpu.reciprocal %109 {approx = true} : vector<8x1xf32> -> vector<8x1xf32>
    %111 = vector.broadcast %110 : vector<8x1xf32> to vector<8x8xf32>
    %112 = arith.mulf %107, %111 : vector<8x8xf32>
    %113 = arith.truncf %112 : vector<8x8xf32> to vector<8x8xbf16>
    %cst_40 = arith.constant dense<0.000000e+00> : vector<8x8xf32>
    %114 = tpu.matmul %113, %98, %cst_40 {dimension_numbers = #tpu.dot_dimension_numbers<[1], [0], [0], [1], [0, 0, 1, 1], [], []>} : vector<8x8xbf16>, vector<8x8xbf16>, vector<8x8xf32> -> vector<8x8xf32>
    %115 = tpu.concatenate %48, %70, %92, %114 in 1 : vector<8x8xf32>, vector<8x8xf32>, vector<8x8xf32>, vector<8x8xf32> -> vector<8x32xf32>
    %116 = arith.truncf %115 : vector<8x32xf32> to vector<8x32xbf16>
    %c0_41 = arith.constant 0 : index
    %c0_42 = arith.constant 0 : index
    %117 = vector.load %arg8[%c0_41, %c0_42] : memref<32x32xbf16, #tpu.memory_space<vmem>>, vector<32x32xbf16>
    %cst_43 = arith.constant dense<0.000000e+00> : vector<8x32xf32>
    %118 = tpu.matmul %116, %117, %cst_43 {dimension_numbers = #tpu.dot_dimension_numbers<[1], [0], [0], [1], [0, 0, 1, 1], [], []>} : vector<8x32xbf16>, vector<32x32xbf16>, vector<8x32xf32> -> vector<8x32xf32>
    %c0_44 = arith.constant 0 : index
    %c0_45 = arith.constant 0 : index
    %119 = vector.load %arg12[%c0_44, %c0_45] : memref<1x32xf32, #tpu.memory_space<vmem>>, vector<1x32xf32>
    %120 = vector.broadcast %119 : vector<1x32xf32> to vector<8x32xf32>
    %121 = arith.addf %118, %120 : vector<8x32xf32>
    %c0_46 = arith.constant 0 : index
    %c0_47 = arith.constant 0 : index
    %c0_48 = arith.constant 0 : index
    %122 = vector.load %arg13[%c0_46, %c0_47, %c0_48] : memref<1x8x32xf32, #tpu.memory_space<vmem>>, vector<1x8x32xf32>
    %123 = vector.shape_cast %122 : vector<1x8x32xf32> to vector<8x32xf32>
    %124 = vector.shape_cast %121 : vector<8x32xf32> to vector<1x8x32xf32>
    tpu.vector_store %arg13[%c0_46, %c0_47, %c0_48], %124 {strides = array<i32>} : memref<1x8x32xf32, #tpu.memory_space<vmem>>, vector<1x8x32xf32>,
    return
  }
  func.func @transform_0(%arg0: i32, %arg1: memref<1xi32, #tpu.memory_space<smem>>) -> (i32, i32, i32) {
    %c0_i32 = arith.constant 0 : i32
    %c0_i32_0 = arith.constant 0 : i32
    %c0_i32_1 = arith.constant 0 : i32
    return %arg0, %c0_i32, %c0_i32_0 : i32, i32, i32
  }
  func.func @transform_1(%arg0: i32, %arg1: memref<1xi32, #tpu.memory_space<smem>>) -> (i32, i32, i32) {
    %c0_i32 = arith.constant 0 : i32
    %c0_i32_0 = arith.constant 0 : i32
    %c0_i32_1 = arith.constant 0 : i32
    return %arg0, %c0_i32, %c0_i32_0 : i32, i32, i32
  }
  func.func @transform_2(%arg0: i32, %arg1: memref<1xi32, #tpu.memory_space<smem>>) -> (i32, i32, i32) {
    %c0_i32 = arith.constant 0 : i32
    %c0_i32_0 = arith.constant 0 : i32
    %c0_i32_1 = arith.constant 0 : i32
    return %arg0, %c0_i32, %c0_i32_0 : i32, i32, i32
  }
  func.func @transform_3(%arg0: i32, %arg1: memref<1xi32, #tpu.memory_space<smem>>) -> (i32, i32) {
    %c0_i32 = arith.constant 0 : i32
    %c0_i32_0 = arith.constant 0 : i32
    %c0_i32_1 = arith.constant 0 : i32
    return %c0_i32, %c0_i32_0 : i32, i32
  }
  func.func @transform_4(%arg0: i32, %arg1: memref<1xi32, #tpu.memory_space<smem>>) -> (i32, i32) {
    %c0_i32 = arith.constant 0 : i32
    %c0_i32_0 = arith.constant 0 : i32
    %c0_i32_1 = arith.constant 0 : i32
    return %c0_i32, %c0_i32_0 : i32, i32
  }
  func.func @transform_5(%arg0: i32, %arg1: memref<1xi32, #tpu.memory_space<smem>>) -> (i32, i32) {
    %c0_i32 = arith.constant 0 : i32
    %c0_i32_0 = arith.constant 0 : i32
    %c0_i32_1 = arith.constant 0 : i32
    return %c0_i32, %c0_i32_0 : i32, i32
  }
  func.func @transform_6(%arg0: i32, %arg1: memref<1xi32, #tpu.memory_space<smem>>) -> (i32, i32) {
    %c0_i32 = arith.constant 0 : i32
    %c0_i32_0 = arith.constant 0 : i32
    %c0_i32_1 = arith.constant 0 : i32
    return %c0_i32, %c0_i32_0 : i32, i32
  }
  func.func @transform_7(%arg0: i32, %arg1: memref<1xi32, #tpu.memory_space<smem>>) -> (i32, i32) {
    %c0_i32 = arith.constant 0 : i32
    %c0_i32_0 = arith.constant 0 : i32
    %c0_i32_1 = arith.constant 0 : i32
    return %c0_i32, %c0_i32_0 : i32, i32
  }
  func.func @transform_8(%arg0: i32, %arg1: memref<1xi32, #tpu.memory_space<smem>>) -> (i32, i32) {
    %c0_i32 = arith.constant 0 : i32
    %c0_i32_0 = arith.constant 0 : i32
    %c0_i32_1 = arith.constant 0 : i32
    return %c0_i32, %c0_i32_0 : i32, i32
  }
  func.func @transform_9(%arg0: i32, %arg1: memref<1xi32, #tpu.memory_space<smem>>) -> (i32, i32) {
    %c0_i32 = arith.constant 0 : i32
    %c0_i32_0 = arith.constant 0 : i32
    %c0_i32_1 = arith.constant 0 : i32
    return %c0_i32, %c0_i32_0 : i32, i32
  }
  func.func @transform_10(%arg0: i32, %arg1: memref<1xi32, #tpu.memory_space<smem>>) -> (i32, i32) {
    %c0_i32 = arith.constant 0 : i32
    %c0_i32_0 = arith.constant 0 : i32
    %c0_i32_1 = arith.constant 0 : i32
    return %c0_i32, %c0_i32_0 : i32, i32
  }
  func.func @transform_11(%arg0: i32, %arg1: memref<1xi32, #tpu.memory_space<smem>>) -> (i32, i32, i32) {
    %c0_i32 = arith.constant 0 : i32
    %c0_i32_0 = arith.constant 0 : i32
    %c0_i32_1 = arith.constant 0 : i32
    return %arg0, %c0_i32, %c0_i32_0 : i32, i32, i32
  }
}

</mosaic_0001>

<llo_original>
// kernel: tpu_custom_call.1
$region0: #{tpu_custom_call.1}
  #allocation0 [shape = 'u32[]', space=smem, size = 0x4, offset = 0x4, fixed_abs, tag = 'smem constant byte address 0x4 - core index']
  #allocation1 [shape = 'u32[72,128]{1,0:T(1,128)}', space=vmem, size = 0x9000, scoped, tag = 'internal scratch']
  #allocation2 [shape = 's32[1]{0}', space=sflag, size = 0x4, scoped, tag = 'scoped memory for tpu_custom_call.1']
  #allocation3 [shape = 's32[1]{0:T(128)S(6)}', space=smem, size = 0x200, scoped, tag = 'prefetched SMEM operand 0']
  %s0 = inlined_call_operand.<no memory space> [shape: s32[1], index: 0, kind: input, shape index: {}]
  %s1 = inlined_call_operand.hbm [shape: f32[2,8,32], index: 1, kind: input, shape index: {}]
  %s2 = inlined_call_operand.hbm [shape: f32[2,8,32], index: 2, kind: input, shape index: {}]
  %s3 = inlined_call_operand.hbm [shape: f32[2,8,32], index: 3, kind: input, shape index: {}]
  %s4 = inlined_call_operand.hbm [shape: bf16[32,32], index: 4, kind: input, shape index: {}]
  %s5 = inlined_call_operand.hbm [shape: bf16[32,32], index: 5, kind: input, shape index: {}]
  %s6 = inlined_call_operand.hbm [shape: bf16[32,32], index: 6, kind: input, shape index: {}]
  %s7 = inlined_call_operand.hbm [shape: bf16[32,32], index: 7, kind: input, shape index: {}]
  %s8 = inlined_call_operand.vmem [shape: f32[1,32], index: 8, kind: input, shape index: {}]
  %s9 = inlined_call_operand.vmem [shape: f32[1,32], index: 9, kind: input, shape index: {}]
  %s10 = inlined_call_operand.vmem [shape: f32[1,32], index: 10, kind: input, shape index: {}]
  %s11 = inlined_call_operand.vmem [shape: f32[1,32], index: 11, kind: input, shape index: {}]
  %s12 = inlined_call_operand.hbm [shape: f32[2,8,32], index: 12, kind: output, shape index: {}]
  %s13 = sld [smem:[#allocation0]]
  $region105: #{tpu_custom_call.1} parent=0
    _
  %s15 = ssub.s32 1, %s13
  %s16 = scalar_select 0, %s15, %s13
  %17 = sst [smem:[#allocation3]] %s0
  $region1: #{tpu_custom_call.1} parent=0
    #allocation4 [shape = 'u8[8192]{0}', space=vmem, size = 0x2000, scoped, tag = 'input window, operand 1']
    #allocation5 [shape = 's32[2]{0}', space=sflag, size = 0x8, scoped, tag = 'scoped memory for tpu_custom_call.1']
    #allocation6 [shape = 's32[2]{0}', space=sflag, size = 0x8, scoped, tag = 'scoped memory for tpu_custom_call.1']
    #allocation7 [shape = 'u8[8192]{0}', space=vmem, size = 0x2000, scoped, tag = 'input window, operand 2']
    #allocation8 [shape = 's32[2]{0}', space=sflag, size = 0x8, scoped, tag = 'scoped memory for tpu_custom_call.1']
    #allocation9 [shape = 'u8[8192]{0}', space=vmem, size = 0x2000, scoped, tag = 'input window, operand 3']
    #allocation10 [shape = 'u8[8192]{0}', space=vmem, size = 0x2000, scoped, tag = 'input window, operand 4, single buffered']
    #allocation11 [shape = 's32[1]{0}', space=sflag, size = 0x4, scoped, tag = 'scoped memory for tpu_custom_call.1']
    #allocation12 [shape = 'u8[8192]{0}', space=vmem, size = 0x2000, scoped, tag = 'input window, operand 5, single buffered']
    #allocation13 [shape = 'u8[8192]{0}', space=vmem, size = 0x2000, scoped, tag = 'input window, operand 6, single buffered']
    #allocation14 [shape = 's32[1]{0}', space=sflag, size = 0x4, scoped, tag = 'scoped memory for tpu_custom_call.1']
    #allocation15 [shape = 'u8[8192]{0}', space=vmem, size = 0x2000, scoped, tag = 'input window, operand 7, single buffered']
    #allocation16 [shape = 'u8[8192]{0}', space=vmem, size = 0x2000, scoped, tag = 'output window, operand 0']
    %18 = vsyncpa [#allocation5], 0
    %s19 = scalar_lea.sflag [#allocation5], 1
    %20 = vsyncpa %s19, 0
    %21 = vsyncpa [#allocation8], 0
    %s22 = scalar_lea.sflag [#allocation8], 1
    %23 = vsyncpa %s22, 0
    %24 = vsyncpa [#allocation11], 0
    %25 = vsyncpa [#allocation14], 0
    %26 = vsyncpa [#allocation6], 0
    %s27 = scalar_lea.sflag [#allocation6], 1
    %28 = vsyncpa %s27, 0
    loop: start=0, step=1, limit=4
    $region2: #{tpu_custom_call.1} parent=1 // loop_pre_header
      _
    $region3: #{tpu_custom_call.1} parent=1 // loop_header
      %s30 = sphi 0, %s34
      %p31 = scmp.ge.s32.totalorder %s30, 4
      %s40 = sphi 0, %s42
      %s43 = sphi 0, %s40
      %s44 = sphi 0, %s43
      %s60 = sphi 0, %s44
      %s66 = sphi 0, %s68
      %s69 = sphi 0, %s66
      %s70 = sphi 0, %s69
      %s86 = sphi 0, %s70
      %s92 = sphi 0, %s94
      %s95 = sphi 0, %s92
      %s96 = sphi 0, %s95
      %s112 = sphi 0, %s96
      %s116 = sphi 0, %s116
      %s118 = sphi 0, %s116
      %s119 = sphi 0, %s118
      %s133 = sphi 0, %s119
      %s137 = sphi 0, %s137
      %s139 = sphi 0, %s137
      %s140 = sphi 0, %s139
      %s154 = sphi 0, %s140
      %s158 = sphi 0, %s158
      %s160 = sphi 0, %s158
      %s161 = sphi 0, %s160
      %s175 = sphi 0, %s161
      %s179 = sphi 0, %s179
      %s181 = sphi 0, %s179
      %s182 = sphi 0, %s181
      %s196 = sphi 0, %s182
      %s200 = sphi 0, %s200
      %s202 = sphi 0, %s200
      %s203 = sphi 0, %s202
      %s217 = sphi 0, %s203
      %s221 = sphi 0, %s221
      %s223 = sphi 0, %s221
      %s224 = sphi 0, %s223
      %s238 = sphi 0, %s224
      %s242 = sphi 0, %s242
      %s244 = sphi 0, %s242
      %s245 = sphi 0, %s244
      %s259 = sphi 0, %s245
      %s263 = sphi 0, %s263
      %s265 = sphi 0, %s263
      %s266 = sphi 0, %s265
      %s280 = sphi 0, %s266
      %s286 = sphi 0, %s288
      %s289 = sphi 0, %s286
      %s290 = sphi 0, %s289
      %s306 = sphi 0, %s290
    $region4: #{tpu_custom_call.1} parent=1 // loop_header_branch
      %33 = sbr.rel (%p31) target = $region8
    $region5: #{tpu_custom_call.1} parent=1 // loop_body
      %s35 = ssub.s32 %s30, 1
      %s36 = ssub.s32 %s30, 2
      %s37 = sadd.s32 %s30, 1
      %s38 = ssub.s32 %s30, %s37
      %p39 = scmp.eq.s32.totalorder %s38, 0
      %s41 = sadd.s32 %s40, 1
      %s42 = scalar_select %p39, %s40, %s41
      %p45 = pneg %p39
      %p46 = scmp.eq.s32.totalorder %s30, 1
      %p47 = por %p45, %p46
      %p48 = scmp.ne.s32.totalorder %s40, %s43
      %p49 = scmp.eq.s32.totalorder %s30, 0
      %p50 = por %p48, %p49
      %p51 = scmp.ne.s32.totalorder %s40, %s43
      %p52 = scmp.eq.s32.totalorder %s35, 1
      %p53 = por %p51, %p52
      %p54 = scmp.ne.s32.totalorder %s43, %s44
      %p55 = scmp.eq.s32.totalorder %s35, 0
      %p56 = por %p54, %p55
      %p57 = scmp.ne.s32.totalorder %s43, %s44
      %p58 = scmp.eq.s32.totalorder %s36, 1
      %p59 = por %p57, %p58
      %p61 = scmp.ne.s32.totalorder %s44, %s60
      %p62 = scmp.eq.s32.totalorder %s36, 0
      %p63 = por %p61, %p62
      %s64 = ssub.s32 %s30, %s37
      %p65 = scmp.eq.s32.totalorder %s64, 0
      %s67 = sadd.s32 %s66, 1
      %s68 = scalar_select %p65, %s66, %s67
      %p71 = pneg %p65
      %p72 = scmp.eq.s32.totalorder %s30, 1
      %p73 = por %p71, %p72
      %p74 = scmp.ne.s32.totalorder %s66, %s69
      %p75 = scmp.eq.s32.totalorder %s30, 0
      %p76 = por %p74, %p75
      %p77 = scmp.ne.s32.totalorder %s66, %s69
      %p78 = scmp.eq.s32.totalorder %s35, 1
      %p79 = por %p77, %p78
      %p80 = scmp.ne.s32.totalorder %s69, %s70
      %p81 = scmp.eq.s32.totalorder %s35, 0
      %p82 = por %p80, %p81
      %p83 = scmp.ne.s32.totalorder %s69, %s70
      %p84 = scmp.eq.s32.totalorder %s36, 1
      %p85 = por %p83, %p84
      %p87 = scmp.ne.s32.totalorder %s70, %s86
      %p88 = scmp.eq.s32.totalorder %s36, 0
      %p89 = por %p87, %p88
      %s90 = ssub.s32 %s30, %s37
      %p91 = scmp.eq.s32.totalorder %s90, 0
      %s93 = sadd.s32 %s92, 1
      %s94 = scalar_select %p91, %s92, %s93
      %p97 = pneg %p91
      %p98 = scmp.eq.s32.totalorder %s30, 1
      %p99 = por %p97, %p98
      %p100 = scmp.ne.s32.totalorder %s92, %s95
      %p101 = scmp.eq.s32.totalorder %s30, 0
      %p102 = por %p100, %p101
      %p103 = scmp.ne.s32.totalorder %s92, %s95
      %p104 = scmp.eq.s32.totalorder %s35, 1
      %p105 = por %p103, %p104
      %p106 = scmp.ne.s32.totalorder %s95, %s96
      %p107 = scmp.eq.s32.totalorder %s35, 0
      %p108 = por %p106, %p107
      %p109 = scmp.ne.s32.totalorder %s95, %s96
      %p110 = scmp.eq.s32.totalorder %s36, 1
      %p111 = por %p109, %p110
      %p113 = scmp.ne.s32.totalorder %s96, %s112
      %p114 = scmp.eq.s32.totalorder %s36, 0
      %p115 = por %p113, %p114
      %s117 = sadd.s32 %s116, 1
      %p120 = scmp.eq.s32.totalorder %s30, 1
      %p121 = scmp.ne.s32.totalorder %s116, %s118
      %p122 = scmp.eq.s32.totalorder %s30, 0
      %p123 = por %p121, %p122
      %p124 = scmp.ne.s32.totalorder %s116, %s118
      %p125 = scmp.eq.s32.totalorder %s35, 1
      %p126 = por %p124, %p125
      %p127 = scmp.ne.s32.totalorder %s118, %s119
      %p128 = scmp.eq.s32.totalorder %s35, 0
      %p129 = por %p127, %p128
      %p130 = scmp.ne.s32.totalorder %s118, %s119
      %p131 = scmp.eq.s32.totalorder %s36, 1
      %p132 = por %p130, %p131
      %p134 = scmp.ne.s32.totalorder %s119, %s133
      %p135 = scmp.eq.s32.totalorder %s36, 0
      %p136 = por %p134, %p135
      %s138 = sadd.s32 %s137, 1
      %p141 = scmp.eq.s32.totalorder %s30, 1
      %p142 = scmp.ne.s32.totalorder %s137, %s139
      %p143 = scmp.eq.s32.totalorder %s30, 0
      %p144 = por %p142, %p143
      %p145 = scmp.ne.s32.totalorder %s137, %s139
      %p146 = scmp.eq.s32.totalorder %s35, 1
      %p147 = por %p145, %p146
      %p148 = scmp.ne.s32.totalorder %s139, %s140
      %p149 = scmp.eq.s32.totalorder %s35, 0
      %p150 = por %p148, %p149
      %p151 = scmp.ne.s32.totalorder %s139, %s140
      %p152 = scmp.eq.s32.totalorder %s36, 1
      %p153 = por %p151, %p152
      %p155 = scmp.ne.s32.totalorder %s140, %s154
      %p156 = scmp.eq.s32.totalorder %s36, 0
      %p157 = por %p155, %p156
      %s159 = sadd.s32 %s158, 1
      %p162 = scmp.eq.s32.totalorder %s30, 1
      %p163 = scmp.ne.s32.totalorder %s158, %s160
      %p164 = scmp.eq.s32.totalorder %s30, 0
      %p165 = por %p163, %p164
      %p166 = scmp.ne.s32.totalorder %s158, %s160
      %p167 = scmp.eq.s32.totalorder %s35, 1
      %p168 = por %p166, %p167
      %p169 = scmp.ne.s32.totalorder %s160, %s161
      %p170 = scmp.eq.s32.totalorder %s35, 0
      %p171 = por %p169, %p170
      %p172 = scmp.ne.s32.totalorder %s160, %s161
      %p173 = scmp.eq.s32.totalorder %s36, 1
      %p174 = por %p172, %p173
      %p176 = scmp.ne.s32.totalorder %s161, %s175
      %p177 = scmp.eq.s32.totalorder %s36, 0
      %p178 = por %p176, %p177
      %s180 = sadd.s32 %s179, 1
      %p183 = scmp.eq.s32.totalorder %s30, 1
      %p184 = scmp.ne.s32.totalorder %s179, %s181
      %p185 = scmp.eq.s32.totalorder %s30, 0
      %p186 = por %p184, %p185
      %p187 = scmp.ne.s32.totalorder %s179, %s181
      %p188 = scmp.eq.s32.totalorder %s35, 1
      %p189 = por %p187, %p188
      %p190 = scmp.ne.s32.totalorder %s181, %s182
      %p191 = scmp.eq.s32.totalorder %s35, 0
      %p192 = por %p190, %p191
      %p193 = scmp.ne.s32.totalorder %s181, %s182
      %p194 = scmp.eq.s32.totalorder %s36, 1
      %p195 = por %p193, %p194
      %p197 = scmp.ne.s32.totalorder %s182, %s196
      %p198 = scmp.eq.s32.totalorder %s36, 0
      %p199 = por %p197, %p198
      %s201 = sadd.s32 %s200, 1
      %p204 = scmp.eq.s32.totalorder %s30, 1
      %p205 = scmp.ne.s32.totalorder %s200, %s202
      %p206 = scmp.eq.s32.totalorder %s30, 0
      %p207 = por %p205, %p206
      %p208 = scmp.ne.s32.totalorder %s200, %s202
      %p209 = scmp.eq.s32.totalorder %s35, 1
      %p210 = por %p208, %p209
      %p211 = scmp.ne.s32.totalorder %s202, %s203
      %p212 = scmp.eq.s32.totalorder %s35, 0
      %p213 = por %p211, %p212
      %p214 = scmp.ne.s32.totalorder %s202, %s203
      %p215 = scmp.eq.s32.totalorder %s36, 1
      %p216 = por %p214, %p215
      %p218 = scmp.ne.s32.totalorder %s203, %s217
      %p219 = scmp.eq.s32.totalorder %s36, 0
      %p220 = por %p218, %p219
      %s222 = sadd.s32 %s221, 1
      %p225 = scmp.eq.s32.totalorder %s30, 1
      %p226 = scmp.ne.s32.totalorder %s221, %s223
      %p227 = scmp.eq.s32.totalorder %s30, 0
      %p228 = por %p226, %p227
      %p229 = scmp.ne.s32.totalorder %s221, %s223
      %p230 = scmp.eq.s32.totalorder %s35, 1
      %p231 = por %p229, %p230
      %p232 = scmp.ne.s32.totalorder %s223, %s224
      %p233 = scmp.eq.s32.totalorder %s35, 0
      %p234 = por %p232, %p233
      %p235 = scmp.ne.s32.totalorder %s223, %s224
      %p236 = scmp.eq.s32.totalorder %s36, 1
      %p237 = por %p235, %p236
      %p239 = scmp.ne.s32.totalorder %s224, %s238
      %p240 = scmp.eq.s32.totalorder %s36, 0
      %p241 = por %p239, %p240
      %s243 = sadd.s32 %s242, 1
      %p246 = scmp.eq.s32.totalorder %s30, 1
      %p247 = scmp.ne.s32.totalorder %s242, %s244
      %p248 = scmp.eq.s32.totalorder %s30, 0
      %p249 = por %p247, %p248
      %p250 = scmp.ne.s32.totalorder %s242, %s244
      %p251 = scmp.eq.s32.totalorder %s35, 1
      %p252 = por %p250, %p251
      %p253 = scmp.ne.s32.totalorder %s244, %s245
      %p254 = scmp.eq.s32.totalorder %s35, 0
      %p255 = por %p253, %p254
      %p256 = scmp.ne.s32.totalorder %s244, %s245
      %p257 = scmp.eq.s32.totalorder %s36, 1
      %p258 = por %p256, %p257
      %p260 = scmp.ne.s32.totalorder %s245, %s259
      %p261 = scmp.eq.s32.totalorder %s36, 0
      %p262 = por %p260, %p261
      %s264 = sadd.s32 %s263, 1
      %p267 = scmp.eq.s32.totalorder %s30, 1
      %p268 = scmp.ne.s32.totalorder %s263, %s265
      %p269 = scmp.eq.s32.totalorder %s30, 0
      %p270 = por %p268, %p269
      %p271 = scmp.ne.s32.totalorder %s263, %s265
      %p272 = scmp.eq.s32.totalorder %s35, 1
      %p273 = por %p271, %p272
      %p274 = scmp.ne.s32.totalorder %s265, %s266
      %p275 = scmp.eq.s32.totalorder %s35, 0
      %p276 = por %p274, %p275
      %p277 = scmp.ne.s32.totalorder %s265, %s266
      %p278 = scmp.eq.s32.totalorder %s36, 1
      %p279 = por %p277, %p278
      %p281 = scmp.ne.s32.totalorder %s266, %s280
      %p282 = scmp.eq.s32.totalorder %s36, 0
      %p283 = por %p281, %p282
      %s284 = ssub.s32 %s30, %s37
      %p285 = scmp.eq.s32.totalorder %s284, 0
      %s287 = sadd.s32 %s286, 1
      %s288 = scalar_select %p285, %s286, %s287
      %p291 = pneg %p285
      %p292 = scmp.eq.s32.totalorder %s30, 1
      %p293 = por %p291, %p292
      %p294 = scmp.ne.s32.totalorder %s286, %s289
      %p295 = scmp.eq.s32.totalorder %s30, 0
      %p296 = por %p294, %p295
      %p297 = scmp.ne.s32.totalorder %s286, %s289
      %p298 = scmp.eq.s32.totalorder %s35, 1
      %p299 = por %p297, %p298
      %p300 = scmp.ne.s32.totalorder %s289, %s290
      %p301 = scmp.eq.s32.totalorder %s35, 0
      %p302 = por %p300, %p301
      %p303 = scmp.ne.s32.totalorder %s289, %s290
      %p304 = scmp.eq.s32.totalorder %s36, 1
      %p305 = por %p303, %p304
      %p307 = scmp.ne.s32.totalorder %s290, %s306
      %p308 = scmp.eq.s32.totalorder %s36, 0
      %p309 = por %p307, %p308
      %p310 = scmp.le.s32.totalorder 1, %s30
      %p311 = scmp.lt.s32.totalorder %s30, 3
      %p312 = pnand %p310, %p311
      %p313 = pneg %p312
      // Predicated region
      $region9: #{tpu_custom_call.1} parent=5 // pred_check
        _
      $region10: #{tpu_custom_call.1} parent=5 // pred_check_branch
        %315 = sbr.rel (%p312) target = $region12
      $region11: #{tpu_custom_call.1} parent=5 // pred_region
        %s316 = ssub.s32 %s30, 1
        // Predicated region
        $region13: #{tpu_custom_call.1} parent=11 // pred_check
          %p317 = pneg %p129
        $region14: #{tpu_custom_call.1} parent=11 // pred_check_branch
          %319 = sbr.rel (%p317) target = $region16
        $region15: #{tpu_custom_call.1} parent=11 // pred_region
          %321 = vsyncadd [#allocation11], 0
          %s322 = sshll.u32 %s4, 4
          %s323 = int_to_ptr.hbm [resolvable:$true] %s322
          %s324 = sshll.u32 [#allocation10], 4
          %s325 = int_to_ptr.vmem [resolvable:$true] %s324
          %330 = dma.hbm_to_vmem [thread:$0]  %s323, 256, %s325, [#allocation11], 64, 64, 4
        $region16: #{tpu_custom_call.1} parent=11 // pred_fallthru
          _
        // Predicated region
        $region17: #{tpu_custom_call.1} parent=11 // pred_check
          %p331 = pneg %p150
        $region18: #{tpu_custom_call.1} parent=11 // pred_check_branch
          %333 = sbr.rel (%p331) target = $region20
        $region19: #{tpu_custom_call.1} parent=11 // pred_region
          %335 = vsyncadd [#allocation11], 0
          %s336 = sshll.u32 %s5, 4
          %s337 = int_to_ptr.hbm [resolvable:$true] %s336
          %s338 = sshll.u32 [#allocation12], 4
          %s339 = int_to_ptr.vmem [resolvable:$true] %s338
          %344 = dma.hbm_to_vmem [thread:$0]  %s337, 256, %s339, [#allocation11], 64, 64, 4
        $region20: #{tpu_custom_call.1} parent=11 // pred_fallthru
          _
        // Predicated region
        $region21: #{tpu_custom_call.1} parent=11 // pred_check
          %p345 = pneg %p171
        $region22: #{tpu_custom_call.1} parent=11 // pred_check_branch
          %347 = sbr.rel (%p345) target = $region24
        $region23: #{tpu_custom_call.1} parent=11 // pred_region
          %349 = vsyncadd [#allocation14], 0
          %s350 = sshll.u32 %s6, 4
          %s351 = int_to_ptr.hbm [resolvable:$true] %s350
          %s352 = sshll.u32 [#allocation13], 4
          %s353 = int_to_ptr.vmem [resolvable:$true] %s352
          %358 = dma.hbm_to_vmem [thread:$0]  %s351, 256, %s353, [#allocation14], 64, 64, 4
        $region24: #{tpu_custom_call.1} parent=11 // pred_fallthru
          _
        // Predicated region
        $region25: #{tpu_custom_call.1} parent=11 // pred_check
          %p359 = pneg %p192
        $region26: #{tpu_custom_call.1} parent=11 // pred_check_branch
          %361 = sbr.rel (%p359) target = $region28
        $region27: #{tpu_custom_call.1} parent=11 // pred_region
          %363 = vsyncadd [#allocation14], 0
          %s364 = sshll.u32 %s7, 4
          %s365 = int_to_ptr.hbm [resolvable:$true] %s364
          %s366 = sshll.u32 [#allocation15], 4
          %s367 = int_to_ptr.vmem [resolvable:$true] %s366
          %372 = dma.hbm_to_vmem [thread:$0]  %s365, 256, %s367, [#allocation14], 64, 64, 4
        $region28: #{tpu_custom_call.1} parent=11 // pred_fallthru
          _
        // Predicated region
        $region29: #{tpu_custom_call.1} parent=11 // pred_check
          %p373 = pneg %p213
        $region30: #{tpu_custom_call.1} parent=11 // pred_check_branch
          %375 = sbr.rel (%p373) target = $region32
        $region31: #{tpu_custom_call.1} parent=11 // pred_region
          _
        $region32: #{tpu_custom_call.1} parent=11 // pred_fallthru
          _
        // Predicated region
        $region33: #{tpu_custom_call.1} parent=11 // pred_check
          %p376 = pneg %p234
        $region34: #{tpu_custom_call.1} parent=11 // pred_check_branch
          %378 = sbr.rel (%p376) target = $region36
        $region35: #{tpu_custom_call.1} parent=11 // pred_region
          _
        $region36: #{tpu_custom_call.1} parent=11 // pred_fallthru
          _
        // Predicated region
        $region37: #{tpu_custom_call.1} parent=11 // pred_check
          %p379 = pneg %p255
        $region38: #{tpu_custom_call.1} parent=11 // pred_check_branch
          %381 = sbr.rel (%p379) target = $region40
        $region39: #{tpu_custom_call.1} parent=11 // pred_region
          _
        $region40: #{tpu_custom_call.1} parent=11 // pred_fallthru
          _
        // Predicated region
        $region41: #{tpu_custom_call.1} parent=11 // pred_check
          %p382 = pneg %p276
        $region42: #{tpu_custom_call.1} parent=11 // pred_check_branch
          %384 = sbr.rel (%p382) target = $region44
        $region43: #{tpu_custom_call.1} parent=11 // pred_region
          _
        $region44: #{tpu_custom_call.1} parent=11 // pred_fallthru
          _
      $region12: #{tpu_custom_call.1} parent=5 // pred_fallthru
        _
      %p385 = scmp.lt.s32.totalorder %s30, 2
      // Predicated region
      $region45: #{tpu_custom_call.1} parent=5 // pred_check
        %p386 = pneg %p385
      $region46: #{tpu_custom_call.1} parent=5 // pred_check_branch
        %388 = sbr.rel (%p386) target = $region48
      $region47: #{tpu_custom_call.1} parent=5 // pred_region
        // Predicated region
        $region49: #{tpu_custom_call.1} parent=47 // pred_check
          %p389 = pneg %p50
        $region50: #{tpu_custom_call.1} parent=47 // pred_check_branch
          %391 = sbr.rel (%p389) target = $region52
        $region51: #{tpu_custom_call.1} parent=47 // pred_region
          %s392 = sand.u32 %s40, 1
          %s393 = scalar_lea.sflag [#allocation5], %s392
          %s394 = sand.u32 %s40, 1
          %s395 = smul.addr %s394, 8
          %s396 = scalar_lea.vmem [#allocation4], %s395
          %398 = vsyncadd %s393, 0
          %s399 = smul.addr %s30, 8
          %s400 = scalar_lea.hbm %s1, %s399
          %s402 = sshll.u32 %s400, 4
          %s403 = int_to_ptr.hbm [resolvable:$true] %s402
          %s404 = sshll.u32 %s396, 4
          %s405 = int_to_ptr.vmem [resolvable:$true] %s404
          %407 = dma.hbm_to_vmem [thread:$0]  %s403, 128, %s405, %s393
        $region52: #{tpu_custom_call.1} parent=47 // pred_fallthru
          _
        // Predicated region
        $region53: #{tpu_custom_call.1} parent=47 // pred_check
          %p408 = pneg %p76
        $region54: #{tpu_custom_call.1} parent=47 // pred_check_branch
          %410 = sbr.rel (%p408) target = $region56
        $region55: #{tpu_custom_call.1} parent=47 // pred_region
          %s411 = sand.u32 %s30, 1
          %s412 = scalar_lea.sflag [#allocation8], %s411
          %s413 = sand.u32 %s66, 1
          %s414 = smul.addr %s413, 8
          %s415 = scalar_lea.vmem [#allocation7], %s414
          %417 = vsyncadd %s412, 0
          %s418 = smul.addr %s30, 8
          %s419 = scalar_lea.hbm %s2, %s418
          %s421 = sshll.u32 %s419, 4
          %s422 = int_to_ptr.hbm [resolvable:$true] %s421
          %s423 = sshll.u32 %s415, 4
          %s424 = int_to_ptr.vmem [resolvable:$true] %s423
          %426 = dma.hbm_to_vmem [thread:$0]  %s422, 128, %s424, %s412
        $region56: #{tpu_custom_call.1} parent=47 // pred_fallthru
          _
        // Predicated region
        $region57: #{tpu_custom_call.1} parent=47 // pred_check
          %p427 = pneg %p102
        $region58: #{tpu_custom_call.1} parent=47 // pred_check_branch
          %429 = sbr.rel (%p427) target = $region60
        $region59: #{tpu_custom_call.1} parent=47 // pred_region
          %s430 = sand.u32 %s30, 1
          %s431 = scalar_lea.sflag [#allocation8], %s430
          %s432 = sand.u32 %s92, 1
          %s433 = smul.addr %s432, 8
          %s434 = scalar_lea.vmem [#allocation9], %s433
          %436 = vsyncadd %s431, 0
          %s437 = smul.addr %s30, 8
          %s438 = scalar_lea.hbm %s3, %s437
          %s440 = sshll.u32 %s438, 4
          %s441 = int_to_ptr.hbm [resolvable:$true] %s440
          %s442 = sshll.u32 %s434, 4
          %s443 = int_to_ptr.vmem [resolvable:$true] %s442
          %445 = dma.hbm_to_vmem [thread:$0]  %s441, 128, %s443, %s431
        $region60: #{tpu_custom_call.1} parent=47 // pred_fallthru
          _
      $region48: #{tpu_custom_call.1} parent=5 // pred_fallthru
        _
      %p446 = scmp.le.s32.totalorder 1, %s30
      %p447 = scmp.lt.s32.totalorder %s30, 3
      %p448 = pnand %p446, %p447
      %p449 = pneg %p448
      // Predicated region
      $region61: #{tpu_custom_call.1} parent=5 // pred_check
        _
      $region62: #{tpu_custom_call.1} parent=5 // pred_check_branch
        %451 = sbr.rel (%p448) target = $region64
      $region63: #{tpu_custom_call.1} parent=5 // pred_region
        %s452 = ssub.s32 %s30, 1
        %s453 = sand.u32 %s43, 1
        %s454 = scalar_lea.sflag [#allocation5], %s453
        %s455 = sand.u32 %s43, 1
        %s456 = smul.addr %s455, 8
        %s457 = scalar_lea.vmem [#allocation4], %s456
        // Predicated region
        $region65: #{tpu_custom_call.1} parent=63 // pred_check
          %p458 = pneg %p56
        $region66: #{tpu_custom_call.1} parent=63 // pred_check_branch
          %460 = sbr.rel (%p458) target = $region68
        $region67: #{tpu_custom_call.1} parent=63 // pred_region
          %462 = dma.done %s454, 128
        $region68: #{tpu_custom_call.1} parent=63 // pred_fallthru
          _
        %s463 = sand.u32 %s35, 1
        %s464 = scalar_lea.sflag [#allocation8], %s463
        %s465 = sand.u32 %s69, 1
        %s466 = smul.addr %s465, 8
        %s467 = scalar_lea.vmem [#allocation7], %s466
        // Predicated region
        $region69: #{tpu_custom_call.1} parent=63 // pred_check
          %p468 = pneg %p82
        $region70: #{tpu_custom_call.1} parent=63 // pred_check_branch
          %470 = sbr.rel (%p468) target = $region72
        $region71: #{tpu_custom_call.1} parent=63 // pred_region
          %472 = dma.done %s464, 128
        $region72: #{tpu_custom_call.1} parent=63 // pred_fallthru
          _
        %s473 = sand.u32 %s35, 1
        %s474 = scalar_lea.sflag [#allocation8], %s473
        %s475 = sand.u32 %s95, 1
        %s476 = smul.addr %s475, 8
        %s477 = scalar_lea.vmem [#allocation9], %s476
        // Predicated region
        $region73: #{tpu_custom_call.1} parent=63 // pred_check
          %p478 = pneg %p108
        $region74: #{tpu_custom_call.1} parent=63 // pred_check_branch
          %480 = sbr.rel (%p478) target = $region76
        $region75: #{tpu_custom_call.1} parent=63 // pred_region
          %482 = dma.done %s474, 128
        $region76: #{tpu_custom_call.1} parent=63 // pred_fallthru
          _
        // Predicated region
        $region77: #{tpu_custom_call.1} parent=63 // pred_check
          %p483 = pneg %p129
        $region78: #{tpu_custom_call.1} parent=63 // pred_check_branch
          %485 = sbr.rel (%p483) target = $region80
        $region79: #{tpu_custom_call.1} parent=63 // pred_region
          %487 = dma.done [#allocation11], 256
        $region80: #{tpu_custom_call.1} parent=63 // pred_fallthru
          _
        // Predicated region
        $region81: #{tpu_custom_call.1} parent=63 // pred_check
          %p488 = pneg %p150
        $region82: #{tpu_custom_call.1} parent=63 // pred_check_branch
          %490 = sbr.rel (%p488) target = $region84
        $region83: #{tpu_custom_call.1} parent=63 // pred_region
          %492 = dma.done [#allocation11], 256
        $region84: #{tpu_custom_call.1} parent=63 // pred_fallthru
          _
        // Predicated region
        $region85: #{tpu_custom_call.1} parent=63 // pred_check
          %p493 = pneg %p171
        $region86: #{tpu_custom_call.1} parent=63 // pred_check_branch
          %495 = sbr.rel (%p493) target = $region88
        $region87: #{tpu_custom_call.1} parent=63 // pred_region
          %497 = dma.done [#allocation14], 256
        $region88: #{tpu_custom_call.1} parent=63 // pred_fallthru
          _
        // Predicated region
        $region89: #{tpu_custom_call.1} parent=63 // pred_check
          %p498 = pneg %p192
        $region90: #{tpu_custom_call.1} parent=63 // pred_check_branch
          %500 = sbr.rel (%p498) target = $region92
        $region91: #{tpu_custom_call.1} parent=63 // pred_region
          %502 = dma.done [#allocation14], 256
        $region92: #{tpu_custom_call.1} parent=63 // pred_fallthru
          _
        %s503 = sand.u32 %s43, 1
        %s504 = scalar_lea.sflag [#allocation5], %s503
        %s505 = sand.u32 %s43, 1
        %s506 = smul.addr %s505, 8
        %s507 = scalar_lea.vmem [#allocation4], %s506
        %p508 = pneg %p56
        %p509 = pneg %p53
        %s510 = sand.u32 %s35, 1
        %s511 = scalar_lea.sflag [#allocation8], %s510
        %s512 = sand.u32 %s69, 1
        %s513 = smul.addr %s512, 8
        %s514 = scalar_lea.vmem [#allocation7], %s513
        %p515 = pneg %p82
        %p516 = pneg %p79
        %s517 = sand.u32 %s35, 1
        %s518 = scalar_lea.sflag [#allocation8], %s517
        %s519 = sand.u32 %s95, 1
        %s520 = smul.addr %s519, 8
        %s521 = scalar_lea.vmem [#allocation9], %s520
        %p522 = pneg %p108
        %p523 = pneg %p105
        %p524 = pneg %p129
        %p525 = pneg %p126
        %p526 = pneg %p150
        %p527 = pneg %p147
        %p528 = pneg %p171
        %p529 = pneg %p168
        %p530 = pneg %p192
        %p531 = pneg %p189
        %p532 = pneg %p213
        %p533 = pneg %p210
        %p534 = pneg %p234
        %p535 = pneg %p231
        %p536 = pneg %p255
        %p537 = pneg %p252
        %p538 = pneg %p276
        %p539 = pneg %p273
        %p540 = pneg %p302
        %p541 = pneg %p299
        %s542 = sand.u32 %s289, 1
        %s543 = scalar_lea.sflag [#allocation6], %s542
        %s544 = sand.u32 %s289, 1
        %s545 = smul.addr %s544, 8
        %s546 = scalar_lea.vmem [#allocation16], %s545
        %v548 = vld [vmem:[%s457] sm:$0xff]
        %v549 = vpack.c.bf16 %v548, %v548
        %v550 = vld [vmem:[%s467] sm:$0xff]
        %v551 = vpack.c.bf16 %v550, %v550
        %v552 = vld [vmem:[%s477] sm:$0xff]
        %v553 = vpack.c.bf16 %v552, %v552
        %v554 = vld [vmem:[#allocation10] sm:$0xf]
        %v555 = vld [vmem:[#allocation10 + $0x4] sm:$0xf]
        %v556 = vld [vmem:[#allocation10 + $0x8] sm:$0xf]
        %v557 = vld [vmem:[#allocation10 + $0xc] sm:$0xf]
        %v558 = vld [vmem:[%s8] sm:$0x1]
        %v560 = vperm.slane %v558, 0
        %v566 = vunpack.c.l.b16 %v554
        %v567 = vunpack.c.l.b16 %v555
        %v568 = vunpack.c.l.b16 %v556
        %v569 = vunpack.c.l.b16 %v557
        %v570 = vpack.c.b16 %v567, %v566
        %v571 = vpack.c.b16 %v569, %v568
        %vm574 = vcmask 261120
        %v576 = vsel %vm574, %v549, 0
        %578 = vmatpush.bf16.msra.mxu0 0
        %579 = vmatpush.bf16.msra.mxu0 0
        %580 = vmatpush.bf16.msra.mxu0 0
        %581 = vmatpush.bf16.msra.mxu0 0
        %582 = vmatpush.bf16.msra.mxu0 0
        %583 = vmatpush.bf16.msra.mxu0 0
        %584 = vmatpush.bf16.msra.mxu0 %v571
        %585 = vmatpush.bf16.msra.mxu0 %v570
        %586 = vmatmul.bf16.gmra.mxu0 %v576
        %v587 = vpop.f32.mrf.mxu0
        %v588 = vadd.f32 %v560, %v587
        %v589 = vpop.f32.mrf.mxu0
        %590 = vdwg.mxu0
        %v591 = vld [vmem:[#allocation12] sm:$0xf]
        %v592 = vld [vmem:[#allocation12 + $0x4] sm:$0xf]
        %v593 = vld [vmem:[#allocation12 + $0x8] sm:$0xf]
        %v594 = vld [vmem:[#allocation12 + $0xc] sm:$0xf]
        %v595 = vld [vmem:[%s9] sm:$0x1]
        %v597 = vperm.slane %v595, 0
        %v603 = vunpack.c.l.b16 %v591
        %v604 = vunpack.c.l.b16 %v592
        %v605 = vunpack.c.l.b16 %v593
        %v606 = vunpack.c.l.b16 %v594
        %v607 = vpack.c.b16 %v604, %v603
        %v608 = vpack.c.b16 %v606, %v605
        %v612 = vsel %vm574, %v551, 0
        %614 = vmatpush.bf16.msra.mxu0 0
        %615 = vmatpush.bf16.msra.mxu0 0
        %616 = vmatpush.bf16.msra.mxu0 0
        %617 = vmatpush.bf16.msra.mxu0 0
        %618 = vmatpush.bf16.msra.mxu0 0
        %619 = vmatpush.bf16.msra.mxu0 0
        %620 = vmatpush.bf16.msra.mxu0 %v608
        %621 = vmatpush.bf16.msra.mxu0 %v607
        %622 = vmatmul.bf16.gmra.mxu0 %v612
        %v623 = vpop.f32.mrf.mxu0
        %v624 = vadd.f32 %v597, %v623
        %v625 = vpop.f32.mrf.mxu0
        %626 = vdwg.mxu0
        %v627 = vld [vmem:[#allocation13] sm:$0xf]
        %v628 = vld [vmem:[#allocation13 + $0x4] sm:$0xf]
        %v629 = vld [vmem:[#allocation13 + $0x8] sm:$0xf]
        %v630 = vld [vmem:[#allocation13 + $0xc] sm:$0xf]
        %v631 = vld [vmem:[%s10] sm:$0x1]
        %v633 = vperm.slane %v631, 0
        %v639 = vunpack.c.l.b16 %v627
        %v640 = vunpack.c.l.b16 %v628
        %v641 = vunpack.c.l.b16 %v629
        %v642 = vunpack.c.l.b16 %v630
        %v643 = vpack.c.b16 %v640, %v639
        %v644 = vpack.c.b16 %v642, %v641
        %v648 = vsel %vm574, %v553, 0
        %650 = vmatpush.bf16.msra.mxu0 0
        %651 = vmatpush.bf16.msra.mxu0 0
        %652 = vmatpush.bf16.msra.mxu0 0
        %653 = vmatpush.bf16.msra.mxu0 0
        %654 = vmatpush.bf16.msra.mxu0 0
        %655 = vmatpush.bf16.msra.mxu0 0
        %656 = vmatpush.bf16.msra.mxu0 %v644
        %657 = vmatpush.bf16.msra.mxu0 %v643
        %658 = vmatmul.bf16.gmra.mxu0 %v648
        %v659 = vpop.f32.mrf.mxu0
        %v660 = vadd.f32 %v633, %v659
        %v661 = vpop.f32.mrf.mxu0
        %662 = vdwg.mxu0
        %s663 = sld [smem:[#allocation3]]
        %p664 = scmp.eq.s32.totalorder %s663, 0
        %s665 = scalar_select %p664, 0.35355338, -0.35355338
        %v666 = vpack.c.bf16 %v588, %v588
        %v667 = vpack.c.bf16 %v624, %v624
        %v668 = vpack.c.bf16 %v660, %v660
        %vm669 = vcmask 64512
        %v671 = vsel %vm669, %v666, 0
        %v674 = vsel %vm669, %v667, 0
        %676 = vmatpush.bf16.xpose.msra.mxu0 0
        %677 = vmatpush.bf16.xpose.msra.mxu0 0
        %678 = vmatpush.bf16.xpose.msra.mxu0 0
        %679 = vmatpush.bf16.xpose.msra.mxu0 0
        %680 = vmatpush.bf16.xpose.msra.mxu0 0
        %681 = vmatpush.bf16.xpose.msra.mxu0 0
        %682 = vmatpush.bf16.xpose.msra.mxu0 0
        %683 = vmatpush.bf16.xpose.msra.mxu0 %v674
        %684 = vmatmul.bf16.gmra.mxu0 %v671
        %v685 = vpop.f32.mrf.mxu0
        %v686 = vadd.f32 0.0, %v685
        %v687 = vpop.f32.mrf.mxu0
        %688 = vdwg.mxu0
        %v689 = vstv %s665
        %v690 = vmul.f32 %v686, %v689
        %v691 = vxor.u32 %v690, 2147483648
        %v692 = vmul.f32 %v691, 1.442695
        %v693 = vpow.pop %v692
        %v694 = vadd.f32 %v693, 1.0
        %v695 = vrcp.pop %v694
        %v696 = vmul.f32 %v694, %v695
        %v697 = vsub.f32 1.0, %v696
        %v698 = vmul.f32 %v695, %v697
        %v699 = vadd.f32 %v695, %v698
        %vm700 = vweird.f32 %v694
        %vm701 = vweird.f32 %v695
        %vm702 = vmor %vm700, %vm701
        %v703 = vsel %vm702, %v695, %v699
        %v704 = vand.u32 2147483647, %v694
        %vm705 = vcmp.eq.f32.partialorder %v704, 8.507059e+37
        %v706 = vand.u32 %v694, 2147483648
        %v707 = vor.u32 1.1754944e-38, %v706
        %v708 = vsel %vm705, %v707, %v703
        %v709 = vmul.f32 1.0, %v708
        %v710 = vmul.f32 %v709, 1.442695
        %v711 = vpow.pop %v710
        %v712 = vsel %vm669, %v711, 0.0
        %713 = vadd.xlane.f32.xlu0 %v712
        %v714 = vpop.xlane.xlu0 %713
        %v715 = vrcp.pop %v714
        %v716 = vmul.f32 %v711, %v715
        %v717 = vpack.c.bf16 %v716, %v716
        %v719 = vsel %vm669, %v717, 0
        %vm721 = vcmask 1043456
        %v723 = vsel %vm721, %v668, 0
        %725 = vmatpush.bf16.msra.mxu0 0
        %726 = vmatpush.bf16.msra.mxu0 0
        %727 = vmatpush.bf16.msra.mxu0 0
        %728 = vmatpush.bf16.msra.mxu0 0
        %729 = vmatpush.bf16.msra.mxu0 0
        %730 = vmatpush.bf16.msra.mxu0 0
        %731 = vmatpush.bf16.msra.mxu0 0
        %732 = vmatpush.bf16.msra.mxu0 %v723
        %733 = vmatmul.bf16.gmra.mxu0 %v719
        %v734 = vpop.f32.mrf.mxu0
        %v735 = vadd.f32 0.0, %v734
        %v736 = vpop.f32.mrf.mxu0
        %737 = vdwg.mxu0
        %739 = vrot.lane.b32.xlu0 %v666, 120
        %v740 = vpop.permute.xlu0 %739
        %742 = vrot.lane.b32.xlu0 %v667, 120
        %v743 = vpop.permute.xlu0 %742
        %v745 = vsel %vm669, %v740, 0
        %v748 = vsel %vm669, %v743, 0
        %750 = vmatpush.bf16.xpose.msra.mxu0 0
        %751 = vmatpush.bf16.xpose.msra.mxu0 0
        %752 = vmatpush.bf16.xpose.msra.mxu0 0
        %753 = vmatpush.bf16.xpose.msra.mxu0 0
        %754 = vmatpush.bf16.xpose.msra.mxu0 0
        %755 = vmatpush.bf16.xpose.msra.mxu0 0
        %756 = vmatpush.bf16.xpose.msra.mxu0 0
        %757 = vmatpush.bf16.xpose.msra.mxu0 %v748
        %758 = vmatmul.bf16.gmra.mxu0 %v745
        %v759 = vpop.f32.mrf.mxu0
        %v760 = vadd.f32 0.0, %v759
        %v761 = vpop.f32.mrf.mxu0
        %762 = vdwg.mxu0
        %v763 = vmul.f32 %v760, %v689
        %v764 = vxor.u32 %v763, 2147483648
        %v765 = vmul.f32 %v764, 1.442695
        %v766 = vpow.pop %v765
        %v767 = vadd.f32 %v766, 1.0
        %v768 = vrcp.pop %v767
        %v769 = vmul.f32 %v767, %v768
        %v770 = vsub.f32 1.0, %v769
        %v771 = vmul.f32 %v768, %v770
        %v772 = vadd.f32 %v768, %v771
        %vm773 = vweird.f32 %v767
        %vm774 = vweird.f32 %v768
        %vm775 = vmor %vm773, %vm774
        %v776 = vsel %vm775, %v768, %v772
        %v777 = vand.u32 2147483647, %v767
        %vm778 = vcmp.eq.f32.partialorder %v777, 8.507059e+37
        %v779 = vand.u32 %v767, 2147483648
        %v780 = vor.u32 1.1754944e-38, %v779
        %v781 = vsel %vm778, %v780, %v776
        %v782 = vmul.f32 1.0, %v781
        %v783 = vmul.f32 %v782, 1.442695
        %v784 = vpow.pop %v783
        %v785 = vsel %vm669, %v784, 0.0
        %786 = vadd.xlane.f32.xlu0 %v785
        %v787 = vpop.xlane.xlu0 %786
        %v788 = vrcp.pop %v787
        %v789 = vmul.f32 %v784, %v788
        %v790 = vpack.c.bf16 %v789, %v789
        %792 = vrot.lane.b32.xlu0 %v668, 120
        %v793 = vpop.permute.xlu0 %792
        %v795 = vsel %vm669, %v790, 0
        %v798 = vsel %vm721, %v793, 0
        %800 = vmatpush.bf16.msra.mxu0 0
        %801 = vmatpush.bf16.msra.mxu0 0
        %802 = vmatpush.bf16.msra.mxu0 0
        %803 = vmatpush.bf16.msra.mxu0 0
        %804 = vmatpush.bf16.msra.mxu0 0
        %805 = vmatpush.bf16.msra.mxu0 0
        %806 = vmatpush.bf16.msra.mxu0 0
        %807 = vmatpush.bf16.msra.mxu0 %v798
        %808 = vmatmul.bf16.gmra.mxu0 %v795
        %v809 = vpop.f32.mrf.mxu0
        %v810 = vadd.f32 0.0, %v809
        %v811 = vpop.f32.mrf.mxu0
        %812 = vdwg.mxu0
        %813 = vrot.lane.b32.xlu0 %v666, 112
        %v814 = vpop.permute.xlu0 %813
        %815 = vrot.lane.b32.xlu0 %v667, 112
        %v816 = vpop.permute.xlu0 %815
        %v818 = vsel %vm669, %v814, 0
        %v821 = vsel %vm669, %v816, 0
        %823 = vmatpush.bf16.xpose.msra.mxu0 0
        %824 = vmatpush.bf16.xpose.msra.mxu0 0
        %825 = vmatpush.bf16.xpose.msra.mxu0 0
        %826 = vmatpush.bf16.xpose.msra.mxu0 0
        %827 = vmatpush.bf16.xpose.msra.mxu0 0
        %828 = vmatpush.bf16.xpose.msra.mxu0 0
        %829 = vmatpush.bf16.xpose.msra.mxu0 0
        %830 = vmatpush.bf16.xpose.msra.mxu0 %v821
        %831 = vmatmul.bf16.gmra.mxu0 %v818
        %v832 = vpop.f32.mrf.mxu0
        %v833 = vadd.f32 0.0, %v832
        %v834 = vpop.f32.mrf.mxu0
        %835 = vdwg.mxu0
        %v836 = vmul.f32 %v833, %v689
        %v837 = vxor.u32 %v836, 2147483648
        %v838 = vmul.f32 %v837, 1.442695
        %v839 = vpow.pop %v838
        %v840 = vadd.f32 %v839, 1.0
        %v841 = vrcp.pop %v840
        %v842 = vmul.f32 %v840, %v841
        %v843 = vsub.f32 1.0, %v842
        %v844 = vmul.f32 %v841, %v843
        %v845 = vadd.f32 %v841, %v844
        %vm846 = vweird.f32 %v840
        %vm847 = vweird.f32 %v841
        %vm848 = vmor %vm846, %vm847
        %v849 = vsel %vm848, %v841, %v845
        %v850 = vand.u32 2147483647, %v840
        %vm851 = vcmp.eq.f32.partialorder %v850, 8.507059e+37
        %v852 = vand.u32 %v840, 2147483648
        %v853 = vor.u32 1.1754944e-38, %v852
        %v854 = vsel %vm851, %v853, %v849
        %v855 = vmul.f32 1.0, %v854
        %v856 = vmul.f32 %v855, 1.442695
        %v857 = vpow.pop %v856
        %v858 = vsel %vm669, %v857, 0.0
        %859 = vadd.xlane.f32.xlu0 %v858
        %v860 = vpop.xlane.xlu0 %859
        %v861 = vrcp.pop %v860
        %v862 = vmul.f32 %v857, %v861
        %v863 = vpack.c.bf16 %v862, %v862
        %864 = vrot.lane.b32.xlu0 %v668, 112
        %v865 = vpop.permute.xlu0 %864
        %v867 = vsel %vm669, %v863, 0
        %v870 = vsel %vm721, %v865, 0
        %872 = vmatpush.bf16.msra.mxu0 0
        %873 = vmatpush.bf16.msra.mxu0 0
        %874 = vmatpush.bf16.msra.mxu0 0
        %875 = vmatpush.bf16.msra.mxu0 0
        %876 = vmatpush.bf16.msra.mxu0 0
        %877 = vmatpush.bf16.msra.mxu0 0
        %878 = vmatpush.bf16.msra.mxu0 0
        %879 = vmatpush.bf16.msra.mxu0 %v870
        %880 = vmatmul.bf16.gmra.mxu0 %v867
        %v881 = vpop.f32.mrf.mxu0
        %v882 = vadd.f32 0.0, %v881
        %v883 = vpop.f32.mrf.mxu0
        %884 = vdwg.mxu0
        %885 = vrot.lane.b32.xlu0 %v666, 104
        %v886 = vpop.permute.xlu0 %885
        %887 = vrot.lane.b32.xlu0 %v667, 104
        %v888 = vpop.permute.xlu0 %887
        %v890 = vsel %vm669, %v886, 0
        %v893 = vsel %vm669, %v888, 0
        %895 = vmatpush.bf16.xpose.msra.mxu0 0
        %896 = vmatpush.bf16.xpose.msra.mxu0 0
        %897 = vmatpush.bf16.xpose.msra.mxu0 0
        %898 = vmatpush.bf16.xpose.msra.mxu0 0
        %899 = vmatpush.bf16.xpose.msra.mxu0 0
        %900 = vmatpush.bf16.xpose.msra.mxu0 0
        %901 = vmatpush.bf16.xpose.msra.mxu0 0
        %902 = vmatpush.bf16.xpose.msra.mxu0 %v893
        %903 = vmatmul.bf16.gmra.mxu0 %v890
        %v904 = vpop.f32.mrf.mxu0
        %v905 = vadd.f32 0.0, %v904
        %v906 = vpop.f32.mrf.mxu0
        %907 = vdwg.mxu0
        %v908 = vmul.f32 %v905, %v689
        %v909 = vxor.u32 %v908, 2147483648
        %v910 = vmul.f32 %v909, 1.442695
        %v911 = vpow.pop %v910
        %v912 = vadd.f32 %v911, 1.0
        %v913 = vrcp.pop %v912
        %v914 = vmul.f32 %v912, %v913
        %v915 = vsub.f32 1.0, %v914
        %v916 = vmul.f32 %v913, %v915
        %v917 = vadd.f32 %v913, %v916
        %vm918 = vweird.f32 %v912
        %vm919 = vweird.f32 %v913
        %vm920 = vmor %vm918, %vm919
        %v921 = vsel %vm920, %v913, %v917
        %v922 = vand.u32 2147483647, %v912
        %vm923 = vcmp.eq.f32.partialorder %v922, 8.507059e+37
        %v924 = vand.u32 %v912, 2147483648
        %v925 = vor.u32 1.1754944e-38, %v924
        %v926 = vsel %vm923, %v925, %v921
        %v927 = vmul.f32 1.0, %v926
        %v928 = vmul.f32 %v927, 1.442695
        %v929 = vpow.pop %v928
        %v930 = vsel %vm669, %v929, 0.0
        %931 = vadd.xlane.f32.xlu0 %v930
        %v932 = vpop.xlane.xlu0 %931
        %v933 = vrcp.pop %v932
        %v934 = vmul.f32 %v929, %v933
        %v935 = vpack.c.bf16 %v934, %v934
        %936 = vrot.lane.b32.xlu0 %v668, 104
        %v937 = vpop.permute.xlu0 %936
        %v939 = vsel %vm669, %v935, 0
        %v942 = vsel %vm721, %v937, 0
        %944 = vmatpush.bf16.msra.mxu0 0
        %945 = vmatpush.bf16.msra.mxu0 0
        %946 = vmatpush.bf16.msra.mxu0 0
        %947 = vmatpush.bf16.msra.mxu0 0
        %948 = vmatpush.bf16.msra.mxu0 0
        %949 = vmatpush.bf16.msra.mxu0 0
        %950 = vmatpush.bf16.msra.mxu0 0
        %951 = vmatpush.bf16.msra.mxu0 %v942
        %952 = vmatmul.bf16.gmra.mxu0 %v939
        %v953 = vpop.f32.mrf.mxu0
        %v954 = vadd.f32 0.0, %v953
        %v955 = vpop.f32.mrf.mxu0
        %956 = vdwg.mxu0
        %958 = vrot.lane.b32.xlu0 %v810, 8
        %v959 = vpop.permute.xlu0 %958
        %962 = vrot.lane.b32.xlu0 %v882, 16
        %v963 = vpop.permute.xlu0 %962
        %966 = vrot.lane.b32.xlu0 %v954, 24
        %v967 = vpop.permute.xlu0 %966
        %v969 = vsel %vm669, %v735, %v959
        %vm970 = vcmask 130048
        %v971 = vsel %vm970, %v969, %v963
        %vm972 = vcmask 195584
        %v973 = vsel %vm972, %v971, %v967
        %v974 = vpack.c.bf16 %v973, %v973
        %v975 = vld [vmem:[#allocation15] sm:$0xf]
        %v976 = vld [vmem:[#allocation15 + $0x4] sm:$0xf]
        %v977 = vld [vmem:[#allocation15 + $0x8] sm:$0xf]
        %v978 = vld [vmem:[#allocation15 + $0xc] sm:$0xf]
        %v979 = vld [vmem:[%s11] sm:$0x1]
        %v981 = vperm.slane %v979, 0
        %v987 = vunpack.c.l.b16 %v975
        %v988 = vunpack.c.l.b16 %v976
        %v989 = vunpack.c.l.b16 %v977
        %v990 = vunpack.c.l.b16 %v978
        %v991 = vpack.c.b16 %v988, %v987
        %v992 = vpack.c.b16 %v990, %v989
        %v996 = vsel %vm574, %v974, 0
        %998 = vmatpush.bf16.msra.mxu0 0
        %999 = vmatpush.bf16.msra.mxu0 0
        %1000 = vmatpush.bf16.msra.mxu0 0
        %1001 = vmatpush.bf16.msra.mxu0 0
        %1002 = vmatpush.bf16.msra.mxu0 0
        %1003 = vmatpush.bf16.msra.mxu0 0
        %1004 = vmatpush.bf16.msra.mxu0 %v992
        %1005 = vmatpush.bf16.msra.mxu0 %v991
        %1006 = vmatmul.bf16.gmra.mxu0 %v996
        %v1007 = vpop.f32.mrf.mxu0
        %v1008 = vadd.f32 %v981, %v1007
        %v1009 = vpop.f32.mrf.mxu0
        %1010 = vdwg.mxu0
        %1011 = vst.msk [vmem:[%s546] sm:$0xff] %vm574, %v1008
        %s1012 = sand.u32 %s289, 1
        %s1013 = scalar_lea.sflag [#allocation6], %s1012
        %s1014 = sand.u32 %s289, 1
        %s1015 = smul.addr %s1014, 8
        %s1016 = scalar_lea.vmem [#allocation16], %s1015
        // Predicated region
        $region93: #{tpu_custom_call.1} parent=63 // pred_check
          %p1017 = pneg %p299
        $region94: #{tpu_custom_call.1} parent=63 // pred_check_branch
          %1019 = sbr.rel (%p1017) target = $region96
        $region95: #{tpu_custom_call.1} parent=63 // pred_region
          %1021 = vsyncadd %s1013, 0
          %s1022 = smul.addr %s35, 8
          %s1023 = scalar_lea.hbm %s12, %s1022
          %s1025 = sshll.u32 %s1016, 4
          %s1026 = int_to_ptr.vmem [resolvable:$true] %s1025
          %s1027 = sshll.u32 %s1023, 4
          %s1028 = int_to_ptr.hbm [resolvable:$true] %s1027
          %1030 = dma.vmem_to_hbm [thread:$0]  %s1026, 128, %s1028, %s1013
        $region96: #{tpu_custom_call.1} parent=63 // pred_fallthru
          _
      $region64: #{tpu_custom_call.1} parent=5 // pred_fallthru
        _
      %p1031 = scmp.le.s32.totalorder 2, %s30
      // Predicated region
      $region97: #{tpu_custom_call.1} parent=5 // pred_check
        %p1032 = pneg %p1031
      $region98: #{tpu_custom_call.1} parent=5 // pred_check_branch
        %1034 = sbr.rel (%p1032) target = $region100
      $region99: #{tpu_custom_call.1} parent=5 // pred_region
        %s1035 = ssub.s32 %s30, 2
        // Predicated region
        $region101: #{tpu_custom_call.1} parent=99 // pred_check
          %p1036 = pneg %p305
        $region102: #{tpu_custom_call.1} parent=99 // pred_check_branch
          %1038 = sbr.rel (%p1036) target = $region104
        $region103: #{tpu_custom_call.1} parent=99 // pred_region
          %s1039 = sand.u32 %s290, 1
          %s1040 = scalar_lea.sflag [#allocation6], %s1039
          %s1041 = sand.u32 %s290, 1
          %s1042 = smul.addr %s1041, 8
          %s1043 = scalar_lea.vmem [#allocation16], %s1042
          %1045 = dma.done %s1040, 128
        $region104: #{tpu_custom_call.1} parent=99 // pred_fallthru
          _
      $region100: #{tpu_custom_call.1} parent=5 // pred_fallthru
        _
    $region6: #{tpu_custom_call.1} parent=1 // loop_footer
      %s34 = sadd.s32 1, %s30
    $region7: #{tpu_custom_call.1} parent=1 // loop_footer_branch
      %29 = sbr.rel target = $region3
    $region8: #{tpu_custom_call.1} parent=1 // loop_exit
      _
    %1046 = vsyncpa [#allocation5], 1
    %s1047 = scalar_lea.sflag [#allocation5], 1
    %1048 = vsyncpa %s1047, 1
    %1049 = vsyncpa [#allocation8], 1
    %s1050 = scalar_lea.sflag [#allocation8], 1
    %1051 = vsyncpa %s1050, 1
    %1052 = vsyncpa [#allocation11], 1
    %1053 = vsyncpa [#allocation14], 1
    %1054 = vsyncpa [#allocation6], 1
    %s1055 = scalar_lea.sflag [#allocation6], 1
    %1056 = vsyncpa %s1055, 1

</llo_original>
